<compile_context>
chip_gen: v7x
topology: tpu7x:2x2x1
jax: 0.10.0
libtpu: 0.0.40
codegen_flags: <defaults>
</compile_context>

<pallas_src>
import jax
import jax.numpy as jnp
from jax import lax
from jax.experimental import pallas as pl
from jax.experimental.pallas import tpu as pltpu

_SQRT_HALF = 0.7071067811865476


def _gelu_exact(x):
    # PyTorch nn.GELU() default = exact erf formulation, evaluated in f32.
    return 0.5 * x * (1.0 + lax.erf(x * _SQRT_HALF))


# ----------------------------- kernels -------------------------------------


def mlp_kernel_resident(x_ref, w1_ref, w2_ref, o_ref):
    # x_ref: (tm, Din_pad), w1_ref: (Din_pad, H_pad), w2_ref: (H_pad, Dout_pad).
    # Weight index maps are constant -> fetched once, resident across all M tiles.
    h = _gelu_exact(jnp.dot(x_ref[...], w1_ref[...],
                            preferred_element_type=jnp.float32))
    o_ref[...] = jnp.dot(h.astype(w2_ref.dtype), w2_ref[...],
                         preferred_element_type=jnp.float32).astype(o_ref.dtype)


def mlp_kernel_chunked(x_ref, w1_ref, w2_ref, o_ref, acc_ref):
    # Reduction over H chunks (grid axis 1, "arbitrary"); acc_ref is an f32 VMEM
    # accumulator resident across the H axis.  The last chunk's contribution is
    # folded directly into the output store (no extra accumulator round trip).
    j = pl.program_id(1)
    last = pl.num_programs(1) - 1

    @pl.when(j == 0)
    def _():
        acc_ref[...] = jnp.zeros_like(acc_ref)

    h = _gelu_exact(jnp.dot(x_ref[...], w1_ref[...],
                            preferred_element_type=jnp.float32))
    partial = jnp.dot(h.astype(w2_ref.dtype), w2_ref[...],
                      preferred_element_type=jnp.float32)

    @pl.when(j < last)
    def _():
        acc_ref[...] += partial

    @pl.when(j == last)
    def _():
        o_ref[...] = (acc_ref[...] + partial).astype(o_ref.dtype)


# ----------------------------- helpers --------------------------------------


def _round_up(a, b):
    return ((a + b - 1) // b) * b


def _pad2d(a, rows, cols):
    pr, pc = rows - a.shape[0], cols - a.shape[1]
    if pr or pc:
        a = jnp.pad(a, ((0, pr), (0, pc)))
    return a


def _vmem_budget_bytes():
    """Per-chip scoped-VMEM budget, leaving headroom for Mosaic internal scratch."""
    try:
        cap = int(pltpu.get_tpu_info().vmem_capacity_bytes)
    except Exception:
        cap = 64 << 20          # conservative fallback: assume v7x-sized VMEM
    if cap <= (64 << 20):
        return 48 << 20         # v7x: 64 MiB physical, keep ~16 MiB headroom
    return 100 << 20            # v5e / v6e: 128 MiB physical


def _pick_tm(M, max_tm):
    """Row-tile size: sublane aligned, low padding waste, >=2 tiles for megacore."""
    m8 = _round_up(max(M, 8), 8)
    if m8 <= max_tm:
        tm = m8
    else:
        best_tm, best_cost = None, None
        for c in (1024, 768, 512, 384, 256, 128):
            if c > max_tm:
                continue
            m_pad = _round_up(M, c)
            cost = m_pad + (m_pad // c) * 64   # padded rows + per-grid-step overhead proxy
            if best_cost is None or cost < best_cost:
                best_tm, best_cost = c, cost
        tm = best_tm if best_tm is not None else 128
    # v7x has 2 TensorCores: give the parallel M axis >=2 tiles when there is
    # enough work (harmless on single-core chips).
    if M > 256 and _round_up(M, tm) // tm == 1:
        tm = _round_up(-(-M // 2), 8)
    return tm


def _resident_bytes(tm, din, hp, dout, itemsize):
    xo = 2 * (tm * din + tm * dout) * itemsize       # double-buffered x / out tiles
    w = 2 * (din * hp + hp * dout) * itemsize        # weights (counted conservatively)
    tmp = tm * hp * (4 + itemsize) + tm * dout * 4   # f32 GELU tile + cast + f32 result
    return xo + w + tmp


def _chunked_bytes(tm, din, th, dout, itemsize):
    tiles = 2 * (tm * din + din * th + th * dout + tm * dout) * itemsize
    tmp = tm * th * (4 + itemsize) + tm * dout * 4   # f32 GELU chunk + cast + partial
    return tiles + tm * dout * 4 + tmp               # + f32 accumulator


# ----------------------------- wrapper --------------------------------------


def mlp_pallas(x, w1, w2, *, tm=512, th=1024, compute_dtype=jnp.bfloat16,
               weight_resident=None):
    """Mlp forward: GELU(x @ w1) @ w2 (bias=False).

    x: (..., D_in), w1: (D_in, H), w2: (H, D_out) -> (..., D_out), in x's dtype.
    compute_dtype: MXU operand dtype (default bf16; GELU + accumulation stay f32).
    weight_resident: None=auto (fits-in-VMEM check), True/False to force a path.
    """
    orig_dtype = x.dtype
    *lead, D_in = x.shape
    H, D_out = w1.shape[1], w2.shape[1]
    assert w1.shape[0] == D_in and w2.shape[0] == H

    if compute_dtype is not None:
        x, w1, w2 = (a.astype(compute_dtype) for a in (x, w1, w2))
    itemsize = jnp.dtype(x.dtype).itemsize

    M = 1
    for d in lead:
        M *= int(d)

    Din_pad = _round_up(D_in, 128)
    Dout_pad = _round_up(D_out, 128)
    H_pad = _round_up(H, 128)

    budget = _vmem_budget_bytes()
    tm = _pick_tm(M, max(int(tm), 8))
    M_pad = _round_up(M, tm)

    if weight_resident is None:
        weight_resident = _resident_bytes(tm, Din_pad, H_pad, Dout_pad, itemsize) <= budget

    if weight_resident:
        needed = _resident_bytes(tm, Din_pad, H_pad, Dout_pad, itemsize)
        grid = (M_pad // tm,)
        in_specs = [
            pl.BlockSpec((tm, Din_pad), lambda i: (i, 0)),
            pl.BlockSpec((Din_pad, H_pad), lambda i: (0, 0)),     # constant -> resident
            pl.BlockSpec((H_pad, Dout_pad), lambda i: (0, 0)),    # constant -> resident
        ]
        out_specs = pl.BlockSpec((tm, Dout_pad), lambda i: (i, 0))
        scratch_shapes = []
        kernel = mlp_kernel_resident
        dim_sem = ("parallel",)
    else:
        th = max(128, (min(int(th), H_pad) // 128) * 128)
        while th > 128 and _chunked_bytes(tm, Din_pad, th, Dout_pad, itemsize) > budget:
            th = max(128, ((th // 2) // 128) * 128)
        while tm > 8 and _chunked_bytes(tm, Din_pad, th, Dout_pad, itemsize) > budget:
            tm = max(8, _round_up(tm // 2, 8))
        M_pad = _round_up(M, tm)
        H_pad = _round_up(H, th)
        needed = _chunked_bytes(tm, Din_pad, th, Dout_pad, itemsize)
        grid = (M_pad // tm, H_pad // th)
        in_specs = [
            pl.BlockSpec((tm, Din_pad), lambda i, j: (i, 0)),
            pl.BlockSpec((Din_pad, th), lambda i, j: (0, j)),
            pl.BlockSpec((th, Dout_pad), lambda i, j: (j, 0)),
        ]
        out_specs = pl.BlockSpec((tm, Dout_pad), lambda i, j: (i, 0))
        scratch_shapes = [pltpu.VMEM((tm, Dout_pad), jnp.float32)]
        kernel = mlp_kernel_chunked
        dim_sem = ("parallel", "arbitrary")

    vmem_limit = int(min(budget, max(needed + (8 << 20), 32 << 20)))

    x2d = _pad2d(x.reshape(M, D_in), M_pad, Din_pad)
    w1p = _pad2d(w1, Din_pad, H_pad)
    w2p = _pad2d(w2, H_pad, Dout_pad)

    out2d = pl.pallas_call(
        kernel,
        out_shape=jax.ShapeDtypeStruct((M_pad, Dout_pad), orig_dtype),
        grid_spec=pltpu.PrefetchScalarGridSpec(
            num_scalar_prefetch=0,
            grid=grid,
            in_specs=in_specs,
            out_specs=out_specs,
            scratch_shapes=scratch_shapes,
        ),
        compiler_params=pltpu.CompilerParams(
            dimension_semantics=dim_sem,
            vmem_limit_bytes=vmem_limit,
        ),
    )(x2d, w1p, w2p)

    return out2d[:M, :D_out].reshape(*lead, D_out)


def mlp_reference(x, w1, w2):
    h = jax.nn.gelu(jnp.einsum("...d,dh->...h", x, w1), approximate=False)
    return jnp.einsum("...h,ho->...o", h, w2)


if __name__ == "__main__":
    key = jax.random.PRNGKey(0)
    B, N = 2, 8
    in_features, hidden_features, out_features = 32, 128, 32

    k_x, k_w1, k_w2 = jax.random.split(key, 3)
    x = jax.random.normal(k_x, (B, N, in_features), dtype=jnp.float32)
    # deterministic synthetic weights (the module uses bias=False by default)
    w1 = jax.random.normal(k_w1, (in_features, hidden_features), dtype=jnp.float32) * 0.02
    w2 = jax.random.normal(k_w2, (hidden_features, out_features), dtype=jnp.float32) * 0.02

    ref = mlp_reference(x, w1, w2)

    # f32-compute, weight-resident path: matches PyTorch nn.GELU() exact-erf closely.
    out_f32 = jax.block_until_ready(mlp_pallas(x, w1, w2, compute_dtype=jnp.float32))
    assert out_f32.dtype == x.dtype
    assert jnp.allclose(out_f32, ref, atol=1e-4, rtol=1e-4), "f32 mismatch vs reference"

    # Default bf16 MXU path (fast path); output dtype still matches the input dtype.
    out_bf16 = jax.block_until_ready(mlp_pallas(x, w1, w2))
    assert out_bf16.dtype == x.dtype
    assert jnp.allclose(out_bf16, ref, atol=3e-2, rtol=3e-2), "bf16 mismatch vs reference"

    # Chunked-reduction fallback (H split with f32 accumulator), forced explicitly
    # with a wider hidden dim so the accumulation across H chunks is exercised.
    H2 = 384
    w1b = jax.random.normal(k_w1, (in_features, H2), dtype=jnp.float32) * 0.02
    w2b = jax.random.normal(k_w2, (H2, out_features), dtype=jnp.float32) * 0.02
    ref2 = mlp_reference(x, w1b, w2b)
    out2 = jax.block_until_ready(
        mlp_pallas(x, w1b, w2b, compute_dtype=jnp.float32,
                   weight_resident=False, th=128))
    assert jnp.allclose(out2, ref2, atol=1e-4, rtol=1e-4), "chunked-path mismatch"

    print("KERNEL_OK")
</pallas_src>

<mosaic_0001>
module attributes {stable_mosaic.version = 11 : i64} {
  func.func @mlp_kernel_resident(%arg0: i32, %arg1: memref<16x128xf32, #tpu.memory_space<vmem>>, %arg2: memref<128x128xf32, #tpu.memory_space<vmem>>, %arg3: memref<128x128xf32, #tpu.memory_space<vmem>>, %arg4: memref<16x128xf32, #tpu.memory_space<vmem>>) attributes {dimension_semantics = [#tpu.dimension_semantics<parallel>], iteration_bounds = array<i64: 1>, scalar_prefetch = 0 : i64, scratch_operands = 0 : i64, tpu.core_type = #tpu.core_type<tc>, window_params = [{transform_indices = @transform_0, window_bounds = array<i64: 16, 128>}, {pipeline_mode = #tpu.pipeline_mode<synchronous>, transform_indices = @transform_1, window_bounds = array<i64: 128, 128>}, {pipeline_mode = #tpu.pipeline_mode<synchronous>, transform_indices = @transform_2, window_bounds = array<i64: 128, 128>}, {transform_indices = @transform_3, window_bounds = array<i64: 16, 128>}]} {
    %c0 = arith.constant 0 : index
    %c0_0 = arith.constant 0 : index
    %0 = vector.load %arg1[%c0, %c0_0] : memref<16x128xf32, #tpu.memory_space<vmem>>, vector<16x128xf32>
    %c0_1 = arith.constant 0 : index
    %c0_2 = arith.constant 0 : index
    %1 = vector.load %arg2[%c0_1, %c0_2] : memref<128x128xf32, #tpu.memory_space<vmem>>, vector<128x128xf32>
    %cst = arith.constant dense<0.000000e+00> : vector<16x128xf32>
    %2 = tpu.matmul %0, %1, %cst {dimension_numbers = #tpu.dot_dimension_numbers<[1], [0], [0], [1], [0, 0, 1, 1], [], []>} : vector<16x128xf32>, vector<128x128xf32>, vector<16x128xf32> -> vector<16x128xf32>
    %cst_3 = arith.constant 5.000000e-01 : f32
    %3 = vector.broadcast %cst_3 : f32 to vector<16x128xf32>
    %4 = arith.mulf %3, %2 : vector<16x128xf32>
    %cst_4 = arith.constant 0.707106769 : f32
    %5 = vector.broadcast %cst_4 : f32 to vector<16x128xf32>
    %6 = arith.mulf %2, %5 : vector<16x128xf32>
    %7 = math.erf %6 : vector<16x128xf32>
    %cst_5 = arith.constant 1.000000e+00 : f32
    %8 = vector.broadcast %cst_5 : f32 to vector<16x128xf32>
    %9 = arith.addf %8, %7 : vector<16x128xf32>
    %10 = arith.mulf %4, %9 : vector<16x128xf32>
    %c0_6 = arith.constant 0 : index
    %c0_7 = arith.constant 0 : index
    %11 = vector.load %arg3[%c0_6, %c0_7] : memref<128x128xf32, #tpu.memory_space<vmem>>, vector<128x128xf32>
    %cst_8 = arith.constant dense<0.000000e+00> : vector<16x128xf32>
    %12 = tpu.matmul %10, %11, %cst_8 {dimension_numbers = #tpu.dot_dimension_numbers<[1], [0], [0], [1], [0, 0, 1, 1], [], []>} : vector<16x128xf32>, vector<128x128xf32>, vector<16x128xf32> -> vector<16x128xf32>
    %c0_9 = arith.constant 0 : index
    %c0_10 = arith.constant 0 : index
    %13 = vector.load %arg4[%c0_9, %c0_10] : memref<16x128xf32, #tpu.memory_space<vmem>>, vector<16x128xf32>
    tpu.vector_store %arg4[%c0_9, %c0_10], %12 {strides = array<i32>} : memref<16x128xf32, #tpu.memory_space<vmem>>, vector<16x128xf32>,
    return
  }
  func.func @transform_0(%arg0: i32) -> (i32, i32) {
    %c0_i32 = arith.constant 0 : i32
    %c0_i32_0 = arith.constant 0 : i32
    return %arg0, %c0_i32 : i32, i32
  }
  func.func @transform_1(%arg0: i32) -> (i32, i32) {
    %c0_i32 = arith.constant 0 : i32
    %c0_i32_0 = arith.constant 0 : i32
    %c0_i32_1 = arith.constant 0 : i32
    return %c0_i32, %c0_i32_0 : i32, i32
  }
  func.func @transform_2(%arg0: i32) -> (i32, i32) {
    %c0_i32 = arith.constant 0 : i32
    %c0_i32_0 = arith.constant 0 : i32
    %c0_i32_1 = arith.constant 0 : i32
    return %c0_i32, %c0_i32_0 : i32, i32
  }
  func.func @transform_3(%arg0: i32) -> (i32, i32) {
    %c0_i32 = arith.constant 0 : i32
    %c0_i32_0 = arith.constant 0 : i32
    return %arg0, %c0_i32 : i32, i32
  }
}

</mosaic_0001>

<llo_original>
// kernel: tpu_custom_call.1
$region0: #{tpu_custom_call.1}
  #allocation0 [shape = 'u32[]', space=smem, size = 0x4, offset = 0x4, fixed_abs, tag = 'smem constant byte address 0x4 - core index']
  #allocation1 [shape = 'u32[144,128]{1,0:T(1,128)}', space=vmem, size = 0x12000, scoped, tag = 'internal scratch']
  %s0 = inlined_call_operand.hbm [shape: f32[16,128], index: 0, kind: input, shape index: {}]
  %s1 = inlined_call_operand.hbm [shape: f32[128,128], index: 1, kind: input, shape index: {}]
  %s2 = inlined_call_operand.hbm [shape: f32[128,128], index: 2, kind: input, shape index: {}]
  %s3 = inlined_call_operand.hbm [shape: f32[16,128], index: 3, kind: output, shape index: {}]
  %s4 = sld [smem:[#allocation0]]
  $region34: #{tpu_custom_call.1} parent=0
    _
  %s6 = ssub.s32 1, %s4
  %s7 = scalar_select 0, %s6, %s4
  $region1: #{tpu_custom_call.1} parent=0
    #allocation2 [shape = 'u8[8192]{0}', space=vmem, size = 0x2000, scoped, tag = 'input window, operand 0, single buffered']
    #allocation3 [shape = 's32[1]{0}', space=sflag, size = 0x4, scoped, tag = 'scoped memory for tpu_custom_call.1']
    #allocation4 [shape = 's32[1]{0}', space=sflag, size = 0x4, scoped, tag = 'scoped memory for tpu_custom_call.1']
    #allocation5 [shape = 'u8[65536]{0}', space=vmem, size = 0x10000, scoped, tag = 'input window, operand 1, single buffered']
    #allocation6 [shape = 's32[1]{0}', space=sflag, size = 0x4, scoped, tag = 'scoped memory for tpu_custom_call.1']
    #allocation7 [shape = 'u8[65536]{0}', space=vmem, size = 0x10000, scoped, tag = 'input window, operand 2, single buffered']
    #allocation8 [shape = 'u8[8192]{0}', space=vmem, size = 0x2000, scoped, tag = 'output window, operand 0, single buffered']
    %8 = vsyncpa [#allocation3], 0
    %9 = vsyncpa [#allocation6], 0
    %10 = vsyncpa [#allocation4], 0
    // Predicated region
    $region2: #{tpu_custom_call.1} parent=1 // pred_check
      _
    $region3: #{tpu_custom_call.1} parent=1 // pred_check_branch
      %12 = sbr.rel (0) target = $region5
    $region4: #{tpu_custom_call.1} parent=1 // pred_region
      %s14 = ssub.s32 256, 256
      %15 = vsyncadd [#allocation3], %s14
      %s16 = sshll.u32 [#allocation2], 4
      %s17 = int_to_ptr.vmem [resolvable:$true] %s16
      %22 = dma.hbm_to_vmem [thread:$0]  %s0, 256, %s17, [#allocation3], 128, 128, 8
    $region5: #{tpu_custom_call.1} parent=1 // pred_fallthru
      _
    // Predicated region
    $region6: #{tpu_custom_call.1} parent=1 // pred_check
      _
    $region7: #{tpu_custom_call.1} parent=1 // pred_check_branch
      %24 = sbr.rel (0) target = $region9
    $region8: #{tpu_custom_call.1} parent=1 // pred_region
      %s26 = ssub.s32 2048, 2048
      %27 = vsyncadd [#allocation6], %s26
      %s28 = sshll.u32 [#allocation5], 4
      %s29 = int_to_ptr.vmem [resolvable:$true] %s28
      %34 = dma.hbm_to_vmem [thread:$0]  %s1, 2048, %s29, [#allocation6], 128, 128, 8
    $region9: #{tpu_custom_call.1} parent=1 // pred_fallthru
      _
    // Predicated region
    $region10: #{tpu_custom_call.1} parent=1 // pred_check
      _
    $region11: #{tpu_custom_call.1} parent=1 // pred_check_branch
      %36 = sbr.rel (0) target = $region13
    $region12: #{tpu_custom_call.1} parent=1 // pred_region
      %s38 = ssub.s32 2048, 2048
      %39 = vsyncadd [#allocation6], %s38
      %s40 = sshll.u32 [#allocation7], 4
      %s41 = int_to_ptr.vmem [resolvable:$true] %s40
      %46 = dma.hbm_to_vmem [thread:$0]  %s2, 2048, %s41, [#allocation6], 128, 128, 8
    $region13: #{tpu_custom_call.1} parent=1 // pred_fallthru
      _
    // Predicated region
    $region14: #{tpu_custom_call.1} parent=1 // pred_check
      _
    $region15: #{tpu_custom_call.1} parent=1 // pred_check_branch
      %48 = sbr.rel (0) target = $region17
    $region16: #{tpu_custom_call.1} parent=1 // pred_region
      %49 = dma.done [#allocation3], 256
    $region17: #{tpu_custom_call.1} parent=1 // pred_fallthru
      _
    // Predicated region
    $region18: #{tpu_custom_call.1} parent=1 // pred_check
      _
    $region19: #{tpu_custom_call.1} parent=1 // pred_check_branch
      %51 = sbr.rel (0) target = $region21
    $region20: #{tpu_custom_call.1} parent=1 // pred_region
      %52 = dma.done [#allocation6], 2048
    $region21: #{tpu_custom_call.1} parent=1 // pred_fallthru
      _
    // Predicated region
    $region22: #{tpu_custom_call.1} parent=1 // pred_check
      _
    $region23: #{tpu_custom_call.1} parent=1 // pred_check_branch
      %54 = sbr.rel (0) target = $region25
    $region24: #{tpu_custom_call.1} parent=1 // pred_region
      %55 = dma.done [#allocation6], 2048
    $region25: #{tpu_custom_call.1} parent=1 // pred_fallthru
      _
    %v56 = vld [vmem:[#allocation2] sm:$0xff]
    %v57 = vld [vmem:[#allocation2 + $0x8] sm:$0xff]
    %v58 = vld [vmem:[#allocation5] sm:$0xff]
    %v59 = vld [vmem:[#allocation5 + $0x8] sm:$0xff]
    %v60 = vld [vmem:[#allocation5 + $0x10] sm:$0xff]
    %v61 = vld [vmem:[#allocation5 + $0x18] sm:$0xff]
    %v62 = vld [vmem:[#allocation5 + $0x20] sm:$0xff]
    %v63 = vld [vmem:[#allocation5 + $0x28] sm:$0xff]
    %v64 = vld [vmem:[#allocation5 + $0x30] sm:$0xff]
    %v65 = vld [vmem:[#allocation5 + $0x38] sm:$0xff]
    %v66 = vld [vmem:[#allocation5 + $0x40] sm:$0xff]
    %v67 = vld [vmem:[#allocation5 + $0x48] sm:$0xff]
    %v68 = vld [vmem:[#allocation5 + $0x50] sm:$0xff]
    %v69 = vld [vmem:[#allocation5 + $0x58] sm:$0xff]
    %v70 = vld [vmem:[#allocation5 + $0x60] sm:$0xff]
    %v71 = vld [vmem:[#allocation5 + $0x68] sm:$0xff]
    %v72 = vld [vmem:[#allocation5 + $0x70] sm:$0xff]
    %v73 = vld [vmem:[#allocation5 + $0x78] sm:$0xff]
    %74 = vmatprep.subr.mxu0 0.0
    %75 = vmatpush1.msra.mxu0 %v58
    %76 = vmatprep.subr.mxu0 0.0
    %77 = vmatpush1.msra.mxu0 %v59
    %78 = vmatprep.subr.mxu0 0.0
    %79 = vmatpush1.msra.mxu0 %v60
    %80 = vmatprep.subr.mxu0 0.0
    %81 = vmatpush1.msra.mxu0 %v61
    %82 = vmatprep.subr.mxu0 0.0
    %83 = vmatpush1.msra.mxu0 %v62
    %84 = vmatprep.subr.mxu0 0.0
    %85 = vmatpush1.msra.mxu0 %v63
    %86 = vmatprep.subr.mxu0 0.0
    %87 = vmatpush1.msra.mxu0 %v64
    %88 = vmatprep.subr.mxu0 0.0
    %89 = vmatpush1.msra.mxu0 %v65
    %90 = vmatprep.subr.mxu0 0.0
    %91 = vmatpush1.msra.mxu0 %v66
    %92 = vmatprep.subr.mxu0 0.0
    %93 = vmatpush1.msra.mxu0 %v67
    %94 = vmatprep.subr.mxu0 0.0
    %95 = vmatpush1.msra.mxu0 %v68
    %96 = vmatprep.subr.mxu0 0.0
    %97 = vmatpush1.msra.mxu0 %v69
    %98 = vmatprep.subr.mxu0 0.0
    %99 = vmatpush1.msra.mxu0 %v70
    %100 = vmatprep.subr.mxu0 0.0
    %101 = vmatpush1.msra.mxu0 %v71
    %102 = vmatprep.subr.mxu0 0.0
    %103 = vmatpush1.msra.mxu0 %v72
    %104 = vmatprep.subr.mxu0 0.0
    %105 = vmatpush1.msra.mxu0 %v73
    %106 = vmatprep.subr.mxu0 0.0
    %107 = vmatpush1.msra.mxu0 0.0
    %108 = vmatprep.subr.mxu0 0.0
    %109 = vmatpush1.msra.mxu0 0.0
    %110 = vmatprep.subr.mxu0 0.0
    %111 = vmatpush1.msra.mxu0 0.0
    %112 = vmatprep.subr.mxu0 0.0
    %113 = vmatpush1.msra.mxu0 0.0
    %114 = vmatprep.subr.mxu0 0.0
    %115 = vmatpush1.msra.mxu0 0.0
    %116 = vmatprep.subr.mxu0 0.0
    %117 = vmatpush1.msra.mxu0 0.0
    %118 = vmatprep.subr.mxu0 0.0
    %119 = vmatpush1.msra.mxu0 0.0
    %120 = vmatprep.subr.mxu0 0.0
    %121 = vmatpush1.msra.mxu0 0.0
    %122 = vmatprep.subr.mxu0 0.0
    %123 = vmatpush1.msra.mxu0 0.0
    %124 = vmatprep.subr.mxu0 0.0
    %125 = vmatpush1.msra.mxu0 0.0
    %126 = vmatprep.subr.mxu0 0.0
    %127 = vmatpush1.msra.mxu0 0.0
    %128 = vmatprep.subr.mxu0 0.0
    %129 = vmatpush1.msra.mxu0 0.0
    %130 = vmatprep.subr.mxu0 0.0
    %131 = vmatpush1.msra.mxu0 0.0
    %132 = vmatprep.subr.mxu0 0.0
    %133 = vmatpush1.msra.mxu0 0.0
    %134 = vmatprep.subr.mxu0 0.0
    %135 = vmatpush1.msra.mxu0 0.0
    %136 = vmatprep.subr.mxu0 0.0
    %137 = vmatpush1.msra.mxu0 0.0
    %138 = vmatprep.mubr.f32.mxu0 0.0
    %139 = vmatmul.mubr.f32.gmra.mrb[0].mxu0 %v56
    %v140 = vpop.f32.mrb[0].mxu0
    %v141 = vadd.f32 0.0, %v140
    %v142 = vpop.f32.mrb[0].mxu0
    %143 = vmatprep.mubr.f32.mxu0 0.0
    %144 = vmatmul.mubr.f32.gmra.mrb[0].mxu0 %v57
    %v145 = vpop.f32.mrb[0].mxu0
    %v146 = vadd.f32 0.0, %v145
    %v147 = vpop.f32.mrb[0].mxu0
    %148 = vdwg.mxu0
    %v149 = vmul.f32 %v141, 0.5
    %v150 = vmul.f32 %v146, 0.5
    %v151 = vmul.f32 %v141, 0.70710677
    %v152 = vmul.f32 %v146, 0.70710677
    %v153 = verf.f32.pop %v151
    %v154 = verf.f32.pop %v152
    %v155 = vadd.f32 %v153, 1.0
    %v156 = vadd.f32 %v154, 1.0
    %v157 = vmul.f32 %v149, %v155
    %v158 = vmul.f32 %v150, %v156
    %v159 = vld [vmem:[#allocation7] sm:$0xff]
    %v160 = vld [vmem:[#allocation7 + $0x8] sm:$0xff]
    %v161 = vld [vmem:[#allocation7 + $0x10] sm:$0xff]
    %v162 = vld [vmem:[#allocation7 + $0x18] sm:$0xff]
    %v163 = vld [vmem:[#allocation7 + $0x20] sm:$0xff]
    %v164 = vld [vmem:[#allocation7 + $0x28] sm:$0xff]
    %v165 = vld [vmem:[#allocation7 + $0x30] sm:$0xff]
    %v166 = vld [vmem:[#allocation7 + $0x38] sm:$0xff]
    %v167 = vld [vmem:[#allocation7 + $0x40] sm:$0xff]
    %v168 = vld [vmem:[#allocation7 + $0x48] sm:$0xff]
    %v169 = vld [vmem:[#allocation7 + $0x50] sm:$0xff]
    %v170 = vld [vmem:[#allocation7 + $0x58] sm:$0xff]
    %v171 = vld [vmem:[#allocation7 + $0x60] sm:$0xff]
    %v172 = vld [vmem:[#allocation7 + $0x68] sm:$0xff]
    %v173 = vld [vmem:[#allocation7 + $0x70] sm:$0xff]
    %v174 = vld [vmem:[#allocation7 + $0x78] sm:$0xff]
    %175 = vmatprep.subr.mxu0 0.0
    %176 = vmatpush1.msra.mxu0 %v159
    %177 = vmatprep.subr.mxu0 0.0
    %178 = vmatpush1.msra.mxu0 %v160
    %179 = vmatprep.subr.mxu0 0.0
    %180 = vmatpush1.msra.mxu0 %v161
    %181 = vmatprep.subr.mxu0 0.0
    %182 = vmatpush1.msra.mxu0 %v162
    %183 = vmatprep.subr.mxu0 0.0
    %184 = vmatpush1.msra.mxu0 %v163
    %185 = vmatprep.subr.mxu0 0.0
    %186 = vmatpush1.msra.mxu0 %v164
    %187 = vmatprep.subr.mxu0 0.0
    %188 = vmatpush1.msra.mxu0 %v165
    %189 = vmatprep.subr.mxu0 0.0
    %190 = vmatpush1.msra.mxu0 %v166
    %191 = vmatprep.subr.mxu0 0.0
    %192 = vmatpush1.msra.mxu0 %v167
    %193 = vmatprep.subr.mxu0 0.0
    %194 = vmatpush1.msra.mxu0 %v168
    %195 = vmatprep.subr.mxu0 0.0
    %196 = vmatpush1.msra.mxu0 %v169
    %197 = vmatprep.subr.mxu0 0.0
    %198 = vmatpush1.msra.mxu0 %v170
    %199 = vmatprep.subr.mxu0 0.0
    %200 = vmatpush1.msra.mxu0 %v171
    %201 = vmatprep.subr.mxu0 0.0
    %202 = vmatpush1.msra.mxu0 %v172
    %203 = vmatprep.subr.mxu0 0.0
    %204 = vmatpush1.msra.mxu0 %v173
    %205 = vmatprep.subr.mxu0 0.0
    %206 = vmatpush1.msra.mxu0 %v174
    %207 = vmatprep.subr.mxu0 0.0
    %208 = vmatpush1.msra.mxu0 0.0
    %209 = vmatprep.subr.mxu0 0.0
    %210 = vmatpush1.msra.mxu0 0.0
    %211 = vmatprep.subr.mxu0 0.0
    %212 = vmatpush1.msra.mxu0 0.0
    %213 = vmatprep.subr.mxu0 0.0
    %214 = vmatpush1.msra.mxu0 0.0
    %215 = vmatprep.subr.mxu0 0.0
    %216 = vmatpush1.msra.mxu0 0.0
    %217 = vmatprep.subr.mxu0 0.0
    %218 = vmatpush1.msra.mxu0 0.0
    %219 = vmatprep.subr.mxu0 0.0
    %220 = vmatpush1.msra.mxu0 0.0
    %221 = vmatprep.subr.mxu0 0.0
    %222 = vmatpush1.msra.mxu0 0.0
    %223 = vmatprep.subr.mxu0 0.0
    %224 = vmatpush1.msra.mxu0 0.0
    %225 = vmatprep.subr.mxu0 0.0
    %226 = vmatpush1.msra.mxu0 0.0
    %227 = vmatprep.subr.mxu0 0.0
    %228 = vmatpush1.msra.mxu0 0.0
    %229 = vmatprep.subr.mxu0 0.0
    %230 = vmatpush1.msra.mxu0 0.0
    %231 = vmatprep.subr.mxu0 0.0
    %232 = vmatpush1.msra.mxu0 0.0
    %233 = vmatprep.subr.mxu0 0.0
    %234 = vmatpush1.msra.mxu0 0.0
    %235 = vmatprep.subr.mxu0 0.0
    %236 = vmatpush1.msra.mxu0 0.0
    %237 = vmatprep.subr.mxu0 0.0
    %238 = vmatpush1.msra.mxu0 0.0
    %239 = vmatprep.mubr.f32.mxu0 0.0
    %240 = vmatmul.mubr.f32.gmra.mrb[0].mxu0 %v157
    %v241 = vpop.f32.mrb[0].mxu0
    %v242 = vadd.f32 0.0, %v241
    %v243 = vpop.f32.mrb[0].mxu0
    %244 = vmatprep.mubr.f32.mxu0 0.0
    %245 = vmatmul.mubr.f32.gmra.mrb[0].mxu0 %v158
    %v246 = vpop.f32.mrb[0].mxu0
    %v247 = vadd.f32 0.0, %v246
    %v248 = vpop.f32.mrb[0].mxu0
    %249 = vdwg.mxu0
    %250 = vst [vmem:[#allocation8] sm:$0xff] %v242
    %251 = vst [vmem:[#allocation8 + $0x8] sm:$0xff] %v247
    // Predicated region
    $region26: #{tpu_custom_call.1} parent=1 // pred_check
      _
    $region27: #{tpu_custom_call.1} parent=1 // pred_check_branch
      %253 = sbr.rel (0) target = $region29
    $region28: #{tpu_custom_call.1} parent=1 // pred_region
      %s255 = ssub.s32 256, 256
      %256 = vsyncadd [#allocation4], %s255
      %s257 = sshll.u32 [#allocation8], 4
      %s258 = int_to_ptr.vmem [resolvable:$true] %s257
      %263 = dma.vmem_to_hbm [thread:$0]  %s258, 256, %s3, [#allocation4], 128, 128, 8
    $region29: #{tpu_custom_call.1} parent=1 // pred_fallthru
      _
    // Predicated region
    $region30: #{tpu_custom_call.1} parent=1 // pred_check
      _
    $region31: #{tpu_custom_call.1} parent=1 // pred_check_branch
      %265 = sbr.rel (0) target = $region33
    $region32: #{tpu_custom_call.1} parent=1 // pred_region
      %266 = dma.done [#allocation4], 256
    $region33: #{tpu_custom_call.1} parent=1 // pred_fallthru
      _
    %267 = vsyncpa [#allocation3], 1
    %268 = vsyncpa [#allocation6], 1
    %269 = vsyncpa [#allocation4], 1

</llo_original>
